<compile_context>
chip_gen: v7x
topology: tpu7x:2x2x1
jax: 0.10.0
libtpu: 0.0.40
codegen_flags: <defaults>
</compile_context>

<pallas_src>
import functools

import jax
import jax.numpy as jnp
import numpy as np
from jax.experimental import pallas as pl
from jax.experimental.pallas import tpu as pltpu


def attn_kernel(x_ref, w_ref, o_ref, *, B, N, a, normalize):
    # x_ref: (B*N, d) ; w_ref: (d, 2a+d) ; o_ref: (B*N, d)
    x = x_ref[...]
    w = w_ref[...]

    # One fused projection matmul: columns [0:a]=Qx, [a:2a]=Kx, [2a:]=Vx.
    xw = jnp.dot(x, w, preferred_element_type=jnp.float32)   # (B*N, 2a+d)
    qx = xw[:, :a]
    kx = xw[:, a:2 * a]
    vx = xw[:, 2 * a:]

    outs = []
    for b in range(B):                       # static unroll; B is tiny
        lo, hi = b * N, (b + 1) * N
        qb = qx[lo:hi, :]                    # (N, a)
        kb = kx[lo:hi, :]                    # (N, a)
        vb = vx[lo:hi, :]                    # (N, d)

        # s[j, i] = Qx[j] . Kx[i]  (== torch A[i, j]); contraction on the
        # trailing feature axis -- no in-kernel transpose needed.
        s = jax.lax.dot_general(qb, kb, (((1,), (1,)), ((), ())),
                                preferred_element_type=jnp.float32)  # (N, N)

        if normalize:
            # softmax over i (last axis of s) == torch softmax(A, dim=1)
            m = jnp.max(s, axis=-1, keepdims=True)
            e = jnp.exp(s - m)
            denom = jnp.sum(e, axis=-1, keepdims=True)
            p = e * pl.reciprocal(denom, approx=True)
        else:
            p = s

        # res[j, :] = sum_i p[j, i] * Vx[i, :]
        outs.append(jnp.dot(p, vb, preferred_element_type=jnp.float32))

    # Single contiguous store of the whole (B*N, d) output block.
    o_ref[...] = jnp.concatenate(outs, axis=0).astype(o_ref.dtype)


def attn_layer_forward(x, Q, K, V, normalize=True):
    B, N, D = x.shape
    a = Q.shape[0]

    # Pre-transpose + fuse the projection weights in the wrapper (free layout
    # plumbing; removes two MXU pushes and all in-kernel transposes).
    W = jnp.concatenate([Q.T, K.T, V.T], axis=1)      # (d, 2a + d)
    x2 = x.reshape(B * N, D)                          # fold batch into the matmul M-dim

    kernel = functools.partial(attn_kernel, B=B, N=N, a=a, normalize=normalize)
    out2 = pl.pallas_call(
        kernel,
        out_shape=jax.ShapeDtypeStruct((B * N, D), x.dtype),
        grid=(1,),                                     # single invocation: no per-step overhead
        in_specs=[
            pl.BlockSpec((B * N, D), lambda i: (0, 0)),       # x (flattened)
            pl.BlockSpec((D, 2 * a + D), lambda i: (0, 0)),   # fused, pre-transposed W
        ],
        out_specs=pl.BlockSpec((B * N, D), lambda i: (0, 0)),
        compiler_params=pltpu.CompilerParams(
            dimension_semantics=("arbitrary",)),
    )(x2, W)
    return out2.reshape(B, N, D)


def attn_layer_reference(x, Q, K, V, normalize=True):
    # Pure-JAX mirror of the torch forward, for verification.
    Qx = jnp.einsum("ad,bnd->bna", Q, x)
    Kx = jnp.einsum("ad,bnd->bna", K, x)
    Vx = jnp.einsum("ed,bnd->bne", V, x)
    A = jnp.einsum("bia,bja->bij", Kx, Qx)          # torch A[b, i, j]
    if normalize:
        A = jax.nn.softmax(A, axis=1)
    return jnp.einsum("bij,bie->bje", A, Vx)


if __name__ == "__main__":
    B, N, d, a = 2, 8, 32, 16

    key = jax.random.PRNGKey(0)
    kq, kk, kv, kx = jax.random.split(key, 4)
    # Deterministic, in-script parameter init (torch.randn analogue).
    Q = jax.random.normal(kq, (a, d), dtype=jnp.float32)
    K = jax.random.normal(kk, (a, d), dtype=jnp.float32)
    V = jax.random.normal(kv, (d, d), dtype=jnp.float32)
    x = jax.random.normal(kx, (B, N, d), dtype=jnp.float32)

    out = attn_layer_forward(x, Q, K, V, normalize=True)
    out = jax.block_until_ready(out)

    ref = attn_layer_reference(x, Q, K, V, normalize=True)
    np.testing.assert_allclose(np.asarray(out), np.asarray(ref),
                               rtol=2e-2, atol=2e-2)
    print("KERNEL_OK")
</pallas_src>

<mosaic_0001>
module attributes {stable_mosaic.version = 11 : i64} {
  func.func @attn_kernel(%arg0: i32, %arg1: memref<16x32xf32, #tpu.memory_space<vmem>>, %arg2: memref<32x64xf32, #tpu.memory_space<vmem>>, %arg3: memref<16x32xf32, #tpu.memory_space<vmem>>) attributes {dimension_semantics = [#tpu.dimension_semantics<arbitrary>], iteration_bounds = array<i64: 1>, scalar_prefetch = 0 : i64, scratch_operands = 0 : i64, tpu.core_type = #tpu.core_type<tc>, window_params = [{pipeline_mode = #tpu.pipeline_mode<synchronous>, transform_indices = @transform_0, window_bounds = array<i64: 16, 32>}, {pipeline_mode = #tpu.pipeline_mode<synchronous>, transform_indices = @transform_1, window_bounds = array<i64: 32, 64>}, {pipeline_mode = #tpu.pipeline_mode<synchronous>, transform_indices = @transform_2, window_bounds = array<i64: 16, 32>}]} {
    %c0 = arith.constant 0 : index
    %c0_0 = arith.constant 0 : index
    %0 = vector.load %arg1[%c0, %c0_0] : memref<16x32xf32, #tpu.memory_space<vmem>>, vector<16x32xf32>
    %c0_1 = arith.constant 0 : index
    %c0_2 = arith.constant 0 : index
    %1 = vector.load %arg2[%c0_1, %c0_2] : memref<32x64xf32, #tpu.memory_space<vmem>>, vector<32x64xf32>
    %cst = arith.constant dense<0.000000e+00> : vector<16x64xf32>
    %2 = tpu.matmul %0, %1, %cst {dimension_numbers = #tpu.dot_dimension_numbers<[1], [0], [0], [1], [0, 0, 1, 1], [], []>} : vector<16x32xf32>, vector<32x64xf32>, vector<16x64xf32> -> vector<16x64xf32>
    %3 = vector.extract_strided_slice %2 {offsets = [0, 0], sizes = [16, 16], strides = [1, 1]} : vector<16x64xf32> to vector<16x16xf32>
    %4 = vector.extract_strided_slice %2 {offsets = [0, 16], sizes = [16, 16], strides = [1, 1]} : vector<16x64xf32> to vector<16x16xf32>
    %5 = vector.extract_strided_slice %2 {offsets = [0, 32], sizes = [16, 32], strides = [1, 1]} : vector<16x64xf32> to vector<16x32xf32>
    %6 = vector.extract_strided_slice %3 {offsets = [0, 0], sizes = [8, 16], strides = [1, 1]} : vector<16x16xf32> to vector<8x16xf32>
    %7 = vector.extract_strided_slice %4 {offsets = [0, 0], sizes = [8, 16], strides = [1, 1]} : vector<16x16xf32> to vector<8x16xf32>
    %8 = vector.extract_strided_slice %5 {offsets = [0, 0], sizes = [8, 32], strides = [1, 1]} : vector<16x32xf32> to vector<8x32xf32>
    %cst_3 = arith.constant dense<0.000000e+00> : vector<8x8xf32>
    %9 = tpu.matmul %6, %7, %cst_3 {dimension_numbers = #tpu.dot_dimension_numbers<[1], [1], [0], [0], [0, 0, 1, 0], [], []>} : vector<8x16xf32>, vector<8x16xf32>, vector<8x8xf32> -> vector<8x8xf32>
    %cst_4 = arith.constant dense<0xFF800000> : vector<8xf32>
    %10 = vector.multi_reduction <maximumf>, %9, %cst_4 [1] : vector<8x8xf32> to vector<8xf32>
    %11 = vector.shape_cast %10 : vector<8xf32> to vector<8x1xf32>
    %12 = vector.broadcast %11 : vector<8x1xf32> to vector<8x8xf32>
    %13 = arith.subf %9, %12 : vector<8x8xf32>
    %14 = math.exp %13 : vector<8x8xf32>
    %cst_5 = arith.constant dense<0.000000e+00> : vector<8xf32>
    %15 = vector.multi_reduction <add>, %14, %cst_5 [1] : vector<8x8xf32> to vector<8xf32>
    %16 = vector.shape_cast %15 : vector<8xf32> to vector<8x1xf32>
    %17 = tpu.reciprocal %16 {approx = true} : vector<8x1xf32> -> vector<8x1xf32>
    %18 = vector.broadcast %17 : vector<8x1xf32> to vector<8x8xf32>
    %19 = arith.mulf %14, %18 : vector<8x8xf32>
    %cst_6 = arith.constant dense<0.000000e+00> : vector<8x32xf32>
    %20 = tpu.matmul %19, %8, %cst_6 {dimension_numbers = #tpu.dot_dimension_numbers<[1], [0], [0], [1], [0, 0, 1, 1], [], []>} : vector<8x8xf32>, vector<8x32xf32>, vector<8x32xf32> -> vector<8x32xf32>
    %21 = vector.extract_strided_slice %3 {offsets = [8, 0], sizes = [8, 16], strides = [1, 1]} : vector<16x16xf32> to vector<8x16xf32>
    %22 = vector.extract_strided_slice %4 {offsets = [8, 0], sizes = [8, 16], strides = [1, 1]} : vector<16x16xf32> to vector<8x16xf32>
    %23 = vector.extract_strided_slice %5 {offsets = [8, 0], sizes = [8, 32], strides = [1, 1]} : vector<16x32xf32> to vector<8x32xf32>
    %cst_7 = arith.constant dense<0.000000e+00> : vector<8x8xf32>
    %24 = tpu.matmul %21, %22, %cst_7 {dimension_numbers = #tpu.dot_dimension_numbers<[1], [1], [0], [0], [0, 0, 1, 0], [], []>} : vector<8x16xf32>, vector<8x16xf32>, vector<8x8xf32> -> vector<8x8xf32>
    %cst_8 = arith.constant dense<0xFF800000> : vector<8xf32>
    %25 = vector.multi_reduction <maximumf>, %24, %cst_8 [1] : vector<8x8xf32> to vector<8xf32>
    %26 = vector.shape_cast %25 : vector<8xf32> to vector<8x1xf32>
    %27 = vector.broadcast %26 : vector<8x1xf32> to vector<8x8xf32>
    %28 = arith.subf %24, %27 : vector<8x8xf32>
    %29 = math.exp %28 : vector<8x8xf32>
    %cst_9 = arith.constant dense<0.000000e+00> : vector<8xf32>
    %30 = vector.multi_reduction <add>, %29, %cst_9 [1] : vector<8x8xf32> to vector<8xf32>
    %31 = vector.shape_cast %30 : vector<8xf32> to vector<8x1xf32>
    %32 = tpu.reciprocal %31 {approx = true} : vector<8x1xf32> -> vector<8x1xf32>
    %33 = vector.broadcast %32 : vector<8x1xf32> to vector<8x8xf32>
    %34 = arith.mulf %29, %33 : vector<8x8xf32>
    %cst_10 = arith.constant dense<0.000000e+00> : vector<8x32xf32>
    %35 = tpu.matmul %34, %23, %cst_10 {dimension_numbers = #tpu.dot_dimension_numbers<[1], [0], [0], [1], [0, 0, 1, 1], [], []>} : vector<8x8xf32>, vector<8x32xf32>, vector<8x32xf32> -> vector<8x32xf32>
    %36 = tpu.concatenate %20, %35 in 0 : vector<8x32xf32>, vector<8x32xf32> -> vector<16x32xf32>
    %c0_11 = arith.constant 0 : index
    %c0_12 = arith.constant 0 : index
    %37 = vector.load %arg3[%c0_11, %c0_12] : memref<16x32xf32, #tpu.memory_space<vmem>>, vector<16x32xf32>
    tpu.vector_store %arg3[%c0_11, %c0_12], %36 {strides = array<i32>} : memref<16x32xf32, #tpu.memory_space<vmem>>, vector<16x32xf32>,
    return
  }
  func.func @transform_0(%arg0: i32) -> (i32, i32) {
    %c0_i32 = arith.constant 0 : i32
    %c0_i32_0 = arith.constant 0 : i32
    %c0_i32_1 = arith.constant 0 : i32
    return %c0_i32, %c0_i32_0 : i32, i32
  }
  func.func @transform_1(%arg0: i32) -> (i32, i32) {
    %c0_i32 = arith.constant 0 : i32
    %c0_i32_0 = arith.constant 0 : i32
    %c0_i32_1 = arith.constant 0 : i32
    return %c0_i32, %c0_i32_0 : i32, i32
  }
  func.func @transform_2(%arg0: i32) -> (i32, i32) {
    %c0_i32 = arith.constant 0 : i32
    %c0_i32_0 = arith.constant 0 : i32
    %c0_i32_1 = arith.constant 0 : i32
    return %c0_i32, %c0_i32_0 : i32, i32
  }
}

</mosaic_0001>

<llo_original>
// kernel: tpu_custom_call.1
$region0: #{tpu_custom_call.1}
  #allocation0 [shape = 'u32[]', space=smem, size = 0x4, offset = 0x4, fixed_abs, tag = 'smem constant byte address 0x4 - core index']
  #allocation1 [shape = 'u32[144,128]{1,0:T(1,128)}', space=vmem, size = 0x12000, scoped, tag = 'internal scratch']
  %s0 = inlined_call_operand.hbm [shape: f32[16,32], index: 0, kind: input, shape index: {}]
  %s1 = inlined_call_operand.hbm [shape: f32[32,64], index: 1, kind: input, shape index: {}]
  %s2 = inlined_call_operand.hbm [shape: f32[16,32], index: 2, kind: output, shape index: {}]
  %s3 = sld [smem:[#allocation0]]
  $region26: #{tpu_custom_call.1} parent=0
    _
  %s5 = ssub.s32 1, %s3
  %s6 = scalar_select 0, %s5, %s3
  $region1: #{tpu_custom_call.1} parent=0
    #allocation2 [shape = 'u8[8192]{0}', space=vmem, size = 0x2000, scoped, tag = 'input window, operand 0, single buffered']
    #allocation3 [shape = 's32[1]{0}', space=sflag, size = 0x4, scoped, tag = 'scoped memory for tpu_custom_call.1']
    #allocation4 [shape = 's32[1]{0}', space=sflag, size = 0x4, scoped, tag = 'scoped memory for tpu_custom_call.1']
    #allocation5 [shape = 'u8[16384]{0}', space=vmem, size = 0x4000, scoped, tag = 'input window, operand 1, single buffered']
    #allocation6 [shape = 's32[1]{0}', space=sflag, size = 0x4, scoped, tag = 'scoped memory for tpu_custom_call.1']
    #allocation7 [shape = 'u8[8192]{0}', space=vmem, size = 0x2000, scoped, tag = 'output window, operand 0, single buffered']
    %7 = vsyncpa [#allocation3], 0
    %8 = vsyncpa [#allocation6], 0
    %9 = vsyncpa [#allocation4], 0
    // Predicated region
    $region2: #{tpu_custom_call.1} parent=1 // pred_check
      _
    $region3: #{tpu_custom_call.1} parent=1 // pred_check_branch
      %11 = sbr.rel (0) target = $region5
    $region4: #{tpu_custom_call.1} parent=1 // pred_region
      %s13 = ssub.s32 256, 256
      %14 = vsyncadd [#allocation3], %s13
      %s15 = sshll.u32 [#allocation2], 4
      %s16 = int_to_ptr.vmem [resolvable:$true] %s15
      %21 = dma.hbm_to_vmem [thread:$0]  %s0, 256, %s16, [#allocation3], 128, 128, 8
    $region5: #{tpu_custom_call.1} parent=1 // pred_fallthru
      _
    // Predicated region
    $region6: #{tpu_custom_call.1} parent=1 // pred_check
      _
    $region7: #{tpu_custom_call.1} parent=1 // pred_check_branch
      %23 = sbr.rel (0) target = $region9
    $region8: #{tpu_custom_call.1} parent=1 // pred_region
      %s25 = ssub.s32 512, 512
      %26 = vsyncadd [#allocation6], %s25
      %s27 = sshll.u32 [#allocation5], 4
      %s28 = int_to_ptr.vmem [resolvable:$true] %s27
      %33 = dma.hbm_to_vmem [thread:$0]  %s1, 512, %s28, [#allocation6], 128, 128, 8
    $region9: #{tpu_custom_call.1} parent=1 // pred_fallthru
      _
    // Predicated region
    $region10: #{tpu_custom_call.1} parent=1 // pred_check
      _
    $region11: #{tpu_custom_call.1} parent=1 // pred_check_branch
      %35 = sbr.rel (0) target = $region13
    $region12: #{tpu_custom_call.1} parent=1 // pred_region
      %36 = dma.done [#allocation3], 256
    $region13: #{tpu_custom_call.1} parent=1 // pred_fallthru
      _
    // Predicated region
    $region14: #{tpu_custom_call.1} parent=1 // pred_check
      _
    $region15: #{tpu_custom_call.1} parent=1 // pred_check_branch
      %38 = sbr.rel (0) target = $region17
    $region16: #{tpu_custom_call.1} parent=1 // pred_region
      %39 = dma.done [#allocation6], 512
    $region17: #{tpu_custom_call.1} parent=1 // pred_fallthru
      _
    %v40 = vld [vmem:[#allocation2] sm:$0xff]
    %v41 = vld [vmem:[#allocation2 + $0x8] sm:$0xff]
    %v42 = vld [vmem:[#allocation5] sm:$0xff]
    %v43 = vld [vmem:[#allocation5 + $0x8] sm:$0xff]
    %v44 = vld [vmem:[#allocation5 + $0x10] sm:$0xff]
    %v45 = vld [vmem:[#allocation5 + $0x18] sm:$0xff]
    %vm46 = vcmask 261120
    %v48 = vsel %vm46, %v40, 0
    %v51 = vsel %vm46, %v41, 0
    %53 = vmatprep.subr.mxu0 0.0
    %54 = vmatpush1.msra.mxu0 %v42
    %55 = vmatprep.subr.mxu0 0.0
    %56 = vmatpush1.msra.mxu0 %v43
    %57 = vmatprep.subr.mxu0 0.0
    %58 = vmatpush1.msra.mxu0 %v44
    %59 = vmatprep.subr.mxu0 0.0
    %60 = vmatpush1.msra.mxu0 %v45
    %61 = vmatprep.subr.mxu0 0.0
    %62 = vmatpush1.msra.mxu0 0.0
    %63 = vmatprep.subr.mxu0 0.0
    %64 = vmatpush1.msra.mxu0 0.0
    %65 = vmatprep.subr.mxu0 0.0
    %66 = vmatpush1.msra.mxu0 0.0
    %67 = vmatprep.subr.mxu0 0.0
    %68 = vmatpush1.msra.mxu0 0.0
    %69 = vmatprep.subr.mxu0 0.0
    %70 = vmatpush1.msra.mxu0 0.0
    %71 = vmatprep.subr.mxu0 0.0
    %72 = vmatpush1.msra.mxu0 0.0
    %73 = vmatprep.subr.mxu0 0.0
    %74 = vmatpush1.msra.mxu0 0.0
    %75 = vmatprep.subr.mxu0 0.0
    %76 = vmatpush1.msra.mxu0 0.0
    %77 = vmatprep.subr.mxu0 0.0
    %78 = vmatpush1.msra.mxu0 0.0
    %79 = vmatprep.subr.mxu0 0.0
    %80 = vmatpush1.msra.mxu0 0.0
    %81 = vmatprep.subr.mxu0 0.0
    %82 = vmatpush1.msra.mxu0 0.0
    %83 = vmatprep.subr.mxu0 0.0
    %84 = vmatpush1.msra.mxu0 0.0
    %85 = vmatprep.subr.mxu0 0.0
    %86 = vmatpush1.msra.mxu0 0.0
    %87 = vmatprep.subr.mxu0 0.0
    %88 = vmatpush1.msra.mxu0 0.0
    %89 = vmatprep.subr.mxu0 0.0
    %90 = vmatpush1.msra.mxu0 0.0
    %91 = vmatprep.subr.mxu0 0.0
    %92 = vmatpush1.msra.mxu0 0.0
    %93 = vmatprep.subr.mxu0 0.0
    %94 = vmatpush1.msra.mxu0 0.0
    %95 = vmatprep.subr.mxu0 0.0
    %96 = vmatpush1.msra.mxu0 0.0
    %97 = vmatprep.subr.mxu0 0.0
    %98 = vmatpush1.msra.mxu0 0.0
    %99 = vmatprep.subr.mxu0 0.0
    %100 = vmatpush1.msra.mxu0 0.0
    %101 = vmatprep.subr.mxu0 0.0
    %102 = vmatpush1.msra.mxu0 0.0
    %103 = vmatprep.subr.mxu0 0.0
    %104 = vmatpush1.msra.mxu0 0.0
    %105 = vmatprep.subr.mxu0 0.0
    %106 = vmatpush1.msra.mxu0 0.0
    %107 = vmatprep.subr.mxu0 0.0
    %108 = vmatpush1.msra.mxu0 0.0
    %109 = vmatprep.subr.mxu0 0.0
    %110 = vmatpush1.msra.mxu0 0.0
    %111 = vmatprep.subr.mxu0 0.0
    %112 = vmatpush1.msra.mxu0 0.0
    %113 = vmatprep.subr.mxu0 0.0
    %114 = vmatpush1.msra.mxu0 0.0
    %115 = vmatprep.subr.mxu0 0.0
    %116 = vmatpush1.msra.mxu0 0.0
    %117 = vmatprep.mubr.f32.mxu0 0.0
    %118 = vmatmul.mubr.f32.gmra.mrb[0].mxu0 %v48
    %v119 = vpop.f32.mrb[0].mxu0
    %v120 = vadd.f32 0.0, %v119
    %v121 = vpop.f32.mrb[0].mxu0
    %122 = vmatprep.mubr.f32.mxu0 0.0
    %123 = vmatmul.mubr.f32.gmra.mrb[0].mxu0 %v51
    %v124 = vpop.f32.mrb[0].mxu0
    %v125 = vadd.f32 0.0, %v124
    %v126 = vpop.f32.mrb[0].mxu0
    %127 = vdwg.mxu0
    %129 = vrot.lane.b32.xlu0 %v120, 112
    %v130 = vpop.permute.xlu0 %129
    %vm131 = vcmask 130048
    %v132 = vsel %vm131, %v120, 0
    %v134 = vsel %vm131, %v130, 0
    %136 = vmatprep.subr.mxu0 0.0
    %137 = vmatpush1.xpose.msra.mxu0 %v134
    %138 = vmatprep.subr.mxu0 0.0
    %139 = vmatpush1.xpose.msra.mxu0 0.0
    %140 = vmatprep.subr.mxu0 0.0
    %141 = vmatpush1.xpose.msra.mxu0 0.0
    %142 = vmatprep.subr.mxu0 0.0
    %143 = vmatpush1.xpose.msra.mxu0 0.0
    %144 = vmatprep.subr.mxu0 0.0
    %145 = vmatpush1.xpose.msra.mxu0 0.0
    %146 = vmatprep.subr.mxu0 0.0
    %147 = vmatpush1.xpose.msra.mxu0 0.0
    %148 = vmatprep.subr.mxu0 0.0
    %149 = vmatpush1.xpose.msra.mxu0 0.0
    %150 = vmatprep.subr.mxu0 0.0
    %151 = vmatpush1.xpose.msra.mxu0 0.0
    %152 = vmatprep.subr.mxu0 0.0
    %153 = vmatpush1.xpose.msra.mxu0 0.0
    %154 = vmatprep.subr.mxu0 0.0
    %155 = vmatpush1.xpose.msra.mxu0 0.0
    %156 = vmatprep.subr.mxu0 0.0
    %157 = vmatpush1.xpose.msra.mxu0 0.0
    %158 = vmatprep.subr.mxu0 0.0
    %159 = vmatpush1.xpose.msra.mxu0 0.0
    %160 = vmatprep.subr.mxu0 0.0
    %161 = vmatpush1.xpose.msra.mxu0 0.0
    %162 = vmatprep.subr.mxu0 0.0
    %163 = vmatpush1.xpose.msra.mxu0 0.0
    %164 = vmatprep.subr.mxu0 0.0
    %165 = vmatpush1.xpose.msra.mxu0 0.0
    %166 = vmatprep.subr.mxu0 0.0
    %167 = vmatpush1.xpose.msra.mxu0 0.0
    %168 = vmatprep.subr.mxu0 0.0
    %169 = vmatpush1.xpose.msra.mxu0 0.0
    %170 = vmatprep.subr.mxu0 0.0
    %171 = vmatpush1.xpose.msra.mxu0 0.0
    %172 = vmatprep.subr.mxu0 0.0
    %173 = vmatpush1.xpose.msra.mxu0 0.0
    %174 = vmatprep.subr.mxu0 0.0
    %175 = vmatpush1.xpose.msra.mxu0 0.0
    %176 = vmatprep.subr.mxu0 0.0
    %177 = vmatpush1.xpose.msra.mxu0 0.0
    %178 = vmatprep.subr.mxu0 0.0
    %179 = vmatpush1.xpose.msra.mxu0 0.0
    %180 = vmatprep.subr.mxu0 0.0
    %181 = vmatpush1.xpose.msra.mxu0 0.0
    %182 = vmatprep.subr.mxu0 0.0
    %183 = vmatpush1.xpose.msra.mxu0 0.0
    %184 = vmatprep.subr.mxu0 0.0
    %185 = vmatpush1.xpose.msra.mxu0 0.0
    %186 = vmatprep.subr.mxu0 0.0
    %187 = vmatpush1.xpose.msra.mxu0 0.0
    %188 = vmatprep.subr.mxu0 0.0
    %189 = vmatpush1.xpose.msra.mxu0 0.0
    %190 = vmatprep.subr.mxu0 0.0
    %191 = vmatpush1.xpose.msra.mxu0 0.0
    %192 = vmatprep.subr.mxu0 0.0
    %193 = vmatpush1.xpose.msra.mxu0 0.0
    %194 = vmatprep.subr.mxu0 0.0
    %195 = vmatpush1.xpose.msra.mxu0 0.0
    %196 = vmatprep.subr.mxu0 0.0
    %197 = vmatpush1.xpose.msra.mxu0 0.0
    %198 = vmatprep.subr.mxu0 0.0
    %199 = vmatpush1.xpose.msra.mxu0 0.0
    %200 = vmatprep.mubr.f32.mxu0 0.0
    %201 = vmatmul.mubr.f32.gmra.mrb[0].mxu0 %v132
    %v202 = vpop.f32.mrb[0].mxu0
    %v203 = vadd.f32 0.0, %v202
    %v204 = vpop.f32.mrb[0].mxu0
    %205 = vdwg.mxu0
    %vm206 = vcmask 64512
    %v207 = vsel %vm206, %v203, -inf
    %208 = vmax.xlane.f32.xlu0 %v207
    %v209 = vpop.xlane.xlu0 %208
    %v210 = vsub.f32 %v203, %v209
    %v211 = vmul.f32 %v210, 1.442695
    %v212 = vpow.pop %v211
    %v213 = vsel %vm206, %v212, 0.0
    %214 = vadd.xlane.f32.xlu0 %v213
    %v215 = vpop.xlane.xlu0 %214
    %v216 = vrcp.pop %v215
    %v217 = vmul.f32 %v212, %v216
    %218 = vrot.lane.b32.xlu0 %v120, 96
    %v219 = vpop.permute.xlu0 %218
    %v222 = vsel %vm206, %v217, 0
    %224 = vmatprep.subr.mxu0 0.0
    %225 = vmatpush1.msra.mxu0 %v219
    %226 = vmatprep.subr.mxu0 0.0
    %227 = vmatpush1.msra.mxu0 0.0
    %228 = vmatprep.subr.mxu0 0.0
    %229 = vmatpush1.msra.mxu0 0.0
    %230 = vmatprep.subr.mxu0 0.0
    %231 = vmatpush1.msra.mxu0 0.0
    %232 = vmatprep.subr.mxu0 0.0
    %233 = vmatpush1.msra.mxu0 0.0
    %234 = vmatprep.subr.mxu0 0.0
    %235 = vmatpush1.msra.mxu0 0.0
    %236 = vmatprep.subr.mxu0 0.0
    %237 = vmatpush1.msra.mxu0 0.0
    %238 = vmatprep.subr.mxu0 0.0
    %239 = vmatpush1.msra.mxu0 0.0
    %240 = vmatprep.subr.mxu0 0.0
    %241 = vmatpush1.msra.mxu0 0.0
    %242 = vmatprep.subr.mxu0 0.0
    %243 = vmatpush1.msra.mxu0 0.0
    %244 = vmatprep.subr.mxu0 0.0
    %245 = vmatpush1.msra.mxu0 0.0
    %246 = vmatprep.subr.mxu0 0.0
    %247 = vmatpush1.msra.mxu0 0.0
    %248 = vmatprep.subr.mxu0 0.0
    %249 = vmatpush1.msra.mxu0 0.0
    %250 = vmatprep.subr.mxu0 0.0
    %251 = vmatpush1.msra.mxu0 0.0
    %252 = vmatprep.subr.mxu0 0.0
    %253 = vmatpush1.msra.mxu0 0.0
    %254 = vmatprep.subr.mxu0 0.0
    %255 = vmatpush1.msra.mxu0 0.0
    %256 = vmatprep.subr.mxu0 0.0
    %257 = vmatpush1.msra.mxu0 0.0
    %258 = vmatprep.subr.mxu0 0.0
    %259 = vmatpush1.msra.mxu0 0.0
    %260 = vmatprep.subr.mxu0 0.0
    %261 = vmatpush1.msra.mxu0 0.0
    %262 = vmatprep.subr.mxu0 0.0
    %263 = vmatpush1.msra.mxu0 0.0
    %264 = vmatprep.subr.mxu0 0.0
    %265 = vmatpush1.msra.mxu0 0.0
    %266 = vmatprep.subr.mxu0 0.0
    %267 = vmatpush1.msra.mxu0 0.0
    %268 = vmatprep.subr.mxu0 0.0
    %269 = vmatpush1.msra.mxu0 0.0
    %270 = vmatprep.subr.mxu0 0.0
    %271 = vmatpush1.msra.mxu0 0.0
    %272 = vmatprep.subr.mxu0 0.0
    %273 = vmatpush1.msra.mxu0 0.0
    %274 = vmatprep.subr.mxu0 0.0
    %275 = vmatpush1.msra.mxu0 0.0
    %276 = vmatprep.subr.mxu0 0.0
    %277 = vmatpush1.msra.mxu0 0.0
    %278 = vmatprep.subr.mxu0 0.0
    %279 = vmatpush1.msra.mxu0 0.0
    %280 = vmatprep.subr.mxu0 0.0
    %281 = vmatpush1.msra.mxu0 0.0
    %282 = vmatprep.subr.mxu0 0.0
    %283 = vmatpush1.msra.mxu0 0.0
    %284 = vmatprep.subr.mxu0 0.0
    %285 = vmatpush1.msra.mxu0 0.0
    %286 = vmatprep.subr.mxu0 0.0
    %287 = vmatpush1.msra.mxu0 0.0
    %288 = vmatprep.mubr.f32.mxu0 0.0
    %289 = vmatmul.mubr.f32.gmra.mrb[0].mxu0 %v222
    %v290 = vpop.f32.mrb[0].mxu0
    %v291 = vadd.f32 0.0, %v290
    %v292 = vpop.f32.mrb[0].mxu0
    %293 = vdwg.mxu0
    %295 = vrot.lane.b32.xlu0 %v125, 112
    %v296 = vpop.permute.xlu0 %295
    %v297 = vsel %vm131, %v125, 0
    %v299 = vsel %vm131, %v296, 0
    %301 = vmatprep.subr.mxu0 0.0
    %302 = vmatpush1.xpose.msra.mxu0 %v299
    %303 = vmatprep.subr.mxu0 0.0
    %304 = vmatpush1.xpose.msra.mxu0 0.0
    %305 = vmatprep.subr.mxu0 0.0
    %306 = vmatpush1.xpose.msra.mxu0 0.0
    %307 = vmatprep.subr.mxu0 0.0
    %308 = vmatpush1.xpose.msra.mxu0 0.0
    %309 = vmatprep.subr.mxu0 0.0
    %310 = vmatpush1.xpose.msra.mxu0 0.0
    %311 = vmatprep.subr.mxu0 0.0
    %312 = vmatpush1.xpose.msra.mxu0 0.0
    %313 = vmatprep.subr.mxu0 0.0
    %314 = vmatpush1.xpose.msra.mxu0 0.0
    %315 = vmatprep.subr.mxu0 0.0
    %316 = vmatpush1.xpose.msra.mxu0 0.0
    %317 = vmatprep.subr.mxu0 0.0
    %318 = vmatpush1.xpose.msra.mxu0 0.0
    %319 = vmatprep.subr.mxu0 0.0
    %320 = vmatpush1.xpose.msra.mxu0 0.0
    %321 = vmatprep.subr.mxu0 0.0
    %322 = vmatpush1.xpose.msra.mxu0 0.0
    %323 = vmatprep.subr.mxu0 0.0
    %324 = vmatpush1.xpose.msra.mxu0 0.0
    %325 = vmatprep.subr.mxu0 0.0
    %326 = vmatpush1.xpose.msra.mxu0 0.0
    %327 = vmatprep.subr.mxu0 0.0
    %328 = vmatpush1.xpose.msra.mxu0 0.0
    %329 = vmatprep.subr.mxu0 0.0
    %330 = vmatpush1.xpose.msra.mxu0 0.0
    %331 = vmatprep.subr.mxu0 0.0
    %332 = vmatpush1.xpose.msra.mxu0 0.0
    %333 = vmatprep.subr.mxu0 0.0
    %334 = vmatpush1.xpose.msra.mxu0 0.0
    %335 = vmatprep.subr.mxu0 0.0
    %336 = vmatpush1.xpose.msra.mxu0 0.0
    %337 = vmatprep.subr.mxu0 0.0
    %338 = vmatpush1.xpose.msra.mxu0 0.0
    %339 = vmatprep.subr.mxu0 0.0
    %340 = vmatpush1.xpose.msra.mxu0 0.0
    %341 = vmatprep.subr.mxu0 0.0
    %342 = vmatpush1.xpose.msra.mxu0 0.0
    %343 = vmatprep.subr.mxu0 0.0
    %344 = vmatpush1.xpose.msra.mxu0 0.0
    %345 = vmatprep.subr.mxu0 0.0
    %346 = vmatpush1.xpose.msra.mxu0 0.0
    %347 = vmatprep.subr.mxu0 0.0
    %348 = vmatpush1.xpose.msra.mxu0 0.0
    %349 = vmatprep.subr.mxu0 0.0
    %350 = vmatpush1.xpose.msra.mxu0 0.0
    %351 = vmatprep.subr.mxu0 0.0
    %352 = vmatpush1.xpose.msra.mxu0 0.0
    %353 = vmatprep.subr.mxu0 0.0
    %354 = vmatpush1.xpose.msra.mxu0 0.0
    %355 = vmatprep.subr.mxu0 0.0
    %356 = vmatpush1.xpose.msra.mxu0 0.0
    %357 = vmatprep.subr.mxu0 0.0
    %358 = vmatpush1.xpose.msra.mxu0 0.0
    %359 = vmatprep.subr.mxu0 0.0
    %360 = vmatpush1.xpose.msra.mxu0 0.0
    %361 = vmatprep.subr.mxu0 0.0
    %362 = vmatpush1.xpose.msra.mxu0 0.0
    %363 = vmatprep.subr.mxu0 0.0
    %364 = vmatpush1.xpose.msra.mxu0 0.0
    %365 = vmatprep.mubr.f32.mxu0 0.0
    %366 = vmatmul.mubr.f32.gmra.mrb[0].mxu0 %v297
    %v367 = vpop.f32.mrb[0].mxu0
    %v368 = vadd.f32 0.0, %v367
    %v369 = vpop.f32.mrb[0].mxu0
    %370 = vdwg.mxu0
    %v371 = vsel %vm206, %v368, -inf
    %372 = vmax.xlane.f32.xlu0 %v371
    %v373 = vpop.xlane.xlu0 %372
    %v374 = vsub.f32 %v368, %v373
    %v375 = vmul.f32 %v374, 1.442695
    %v376 = vpow.pop %v375
    %v377 = vsel %vm206, %v376, 0.0
    %378 = vadd.xlane.f32.xlu0 %v377
    %v379 = vpop.xlane.xlu0 %378
    %v380 = vrcp.pop %v379
    %v381 = vmul.f32 %v376, %v380
    %382 = vrot.lane.b32.xlu0 %v125, 96
    %v383 = vpop.permute.xlu0 %382
    %v386 = vsel %vm206, %v381, 0
    %388 = vmatprep.subr.mxu0 0.0
    %389 = vmatpush1.msra.mxu0 %v383
    %390 = vmatprep.subr.mxu0 0.0
    %391 = vmatpush1.msra.mxu0 0.0
    %392 = vmatprep.subr.mxu0 0.0
    %393 = vmatpush1.msra.mxu0 0.0
    %394 = vmatprep.subr.mxu0 0.0
    %395 = vmatpush1.msra.mxu0 0.0
    %396 = vmatprep.subr.mxu0 0.0
    %397 = vmatpush1.msra.mxu0 0.0
    %398 = vmatprep.subr.mxu0 0.0
    %399 = vmatpush1.msra.mxu0 0.0
    %400 = vmatprep.subr.mxu0 0.0
    %401 = vmatpush1.msra.mxu0 0.0
    %402 = vmatprep.subr.mxu0 0.0
    %403 = vmatpush1.msra.mxu0 0.0
    %404 = vmatprep.subr.mxu0 0.0
    %405 = vmatpush1.msra.mxu0 0.0
    %406 = vmatprep.subr.mxu0 0.0
    %407 = vmatpush1.msra.mxu0 0.0
    %408 = vmatprep.subr.mxu0 0.0
    %409 = vmatpush1.msra.mxu0 0.0
    %410 = vmatprep.subr.mxu0 0.0
    %411 = vmatpush1.msra.mxu0 0.0
    %412 = vmatprep.subr.mxu0 0.0
    %413 = vmatpush1.msra.mxu0 0.0
    %414 = vmatprep.subr.mxu0 0.0
    %415 = vmatpush1.msra.mxu0 0.0
    %416 = vmatprep.subr.mxu0 0.0
    %417 = vmatpush1.msra.mxu0 0.0
    %418 = vmatprep.subr.mxu0 0.0
    %419 = vmatpush1.msra.mxu0 0.0
    %420 = vmatprep.subr.mxu0 0.0
    %421 = vmatpush1.msra.mxu0 0.0
    %422 = vmatprep.subr.mxu0 0.0
    %423 = vmatpush1.msra.mxu0 0.0
    %424 = vmatprep.subr.mxu0 0.0
    %425 = vmatpush1.msra.mxu0 0.0
    %426 = vmatprep.subr.mxu0 0.0
    %427 = vmatpush1.msra.mxu0 0.0
    %428 = vmatprep.subr.mxu0 0.0
    %429 = vmatpush1.msra.mxu0 0.0
    %430 = vmatprep.subr.mxu0 0.0
    %431 = vmatpush1.msra.mxu0 0.0
    %432 = vmatprep.subr.mxu0 0.0
    %433 = vmatpush1.msra.mxu0 0.0
    %434 = vmatprep.subr.mxu0 0.0
    %435 = vmatpush1.msra.mxu0 0.0
    %436 = vmatprep.subr.mxu0 0.0
    %437 = vmatpush1.msra.mxu0 0.0
    %438 = vmatprep.subr.mxu0 0.0
    %439 = vmatpush1.msra.mxu0 0.0
    %440 = vmatprep.subr.mxu0 0.0
    %441 = vmatpush1.msra.mxu0 0.0
    %442 = vmatprep.subr.mxu0 0.0
    %443 = vmatpush1.msra.mxu0 0.0
    %444 = vmatprep.subr.mxu0 0.0
    %445 = vmatpush1.msra.mxu0 0.0
    %446 = vmatprep.subr.mxu0 0.0
    %447 = vmatpush1.msra.mxu0 0.0
    %448 = vmatprep.subr.mxu0 0.0
    %449 = vmatpush1.msra.mxu0 0.0
    %450 = vmatprep.subr.mxu0 0.0
    %451 = vmatpush1.msra.mxu0 0.0
    %452 = vmatprep.mubr.f32.mxu0 0.0
    %453 = vmatmul.mubr.f32.gmra.mrb[0].mxu0 %v386
    %v454 = vpop.f32.mrb[0].mxu0
    %v455 = vadd.f32 0.0, %v454
    %v456 = vpop.f32.mrb[0].mxu0
    %457 = vdwg.mxu0
    %458 = vst.msk [vmem:[#allocation7] sm:$0xff] %vm46, %v291
    %459 = vst.msk [vmem:[#allocation7 + $0x8] sm:$0xff] %vm46, %v455
    // Predicated region
    $region18: #{tpu_custom_call.1} parent=1 // pred_check
      _
    $region19: #{tpu_custom_call.1} parent=1 // pred_check_branch
      %461 = sbr.rel (0) target = $region21
    $region20: #{tpu_custom_call.1} parent=1 // pred_region
      %s463 = ssub.s32 256, 256
      %464 = vsyncadd [#allocation4], %s463
      %s465 = sshll.u32 [#allocation7], 4
      %s466 = int_to_ptr.vmem [resolvable:$true] %s465
      %471 = dma.vmem_to_hbm [thread:$0]  %s466, 256, %s2, [#allocation4], 128, 128, 8
    $region21: #{tpu_custom_call.1} parent=1 // pred_fallthru
      _
    // Predicated region
    $region22: #{tpu_custom_call.1} parent=1 // pred_check
      _
    $region23: #{tpu_custom_call.1} parent=1 // pred_check_branch
      %473 = sbr.rel (0) target = $region25
    $region24: #{tpu_custom_call.1} parent=1 // pred_region
      %474 = dma.done [#allocation4], 256
    $region25: #{tpu_custom_call.1} parent=1 // pred_fallthru
      _
    %475 = vsyncpa [#allocation3], 1
    %476 = vsyncpa [#allocation6], 1
    %477 = vsyncpa [#allocation4], 1

</llo_original>
